<compile_context>
chip_gen: v5e
topology: v5e:2x2
jax: 0.10.0
libtpu: 0.0.40
codegen_flags: <defaults>
</compile_context>

<pallas_src>
import functools

import jax
import jax.numpy as jnp
from jax.experimental import pallas as pl
from jax.experimental.pallas import tpu as pltpu

NUM_EMBS = 100
MIN_MAX = (-2.0, 2.0)


def _round_up(a, b):
    return (a + b - 1) // b * b


def _emb_encoder_kernel(x_ref, table_ref, o_ref, *, num_embs, num_features,
                        embs_padded, inv_f, idx_offset):
    """One tile: (TM, F) inputs -> (TM, E) mean-pooled embeddings.

    For each feature j, build a (TM, 128) one-hot over that feature's padded
    vocabulary slice and multiply it against the matching 128-row table slice
    on the MXU; accumulating the F products and scaling by 1/F implements the
    .mean(-2) over features.
    """
    x = x_ref[...]                                              # (TM, F) f32
    # discretize: (x - min // split).int().clamp(0, num_embs - 1)
    idx = jnp.clip((x - idx_offset).astype(jnp.int32), 0, num_embs - 1)

    tm = x.shape[0]
    em = o_ref.shape[-1]
    # lane-axis iota over one feature's (padded) vocabulary slice
    iota_e = jax.lax.broadcasted_iota(jnp.int32, (tm, embs_padded), 1)

    acc = jnp.zeros((tm, em), jnp.float32)
    for j in range(num_features):                               # static unroll, F small
        onehot = (idx[:, j:j + 1] == iota_e).astype(jnp.float32)      # (TM, 128)
        tbl_j = table_ref[pl.ds(j * embs_padded, embs_padded), :]     # (128, E)
        acc = acc + jnp.dot(onehot, tbl_j, preferred_element_type=jnp.float32)

    o_ref[...] = (acc * inv_f).astype(o_ref.dtype)


def init_embedding_table(key, num_features, em_size, num_embs=NUM_EMBS,
                         initrange=0.1, max_norm=1.0):
    """Deterministic init: uniform(-0.1, 0.1), then max_norm=True renorm."""
    # TODO(synk): nn.Embedding(max_norm=True) renorms lazily on access/in-place
    # during training; here the whole table is renormed once (forward-equivalent).
    w = jax.random.uniform(key, (num_embs * num_features, em_size),
                           minval=-initrange, maxval=initrange,
                           dtype=jnp.float32)
    norms = jnp.linalg.norm(w, axis=-1, keepdims=True)
    scale = jnp.where(norms > max_norm, max_norm / (norms + 1e-7), 1.0)
    return w * scale


def embedding_encoder_forward(x, table, *, num_embs=NUM_EMBS, tm=1024):
    B, S, F = x.shape
    V, E = table.shape
    assert V == num_embs * F
    M = B * S

    split_size = (MIN_MAX[1] - MIN_MAX[0]) / num_embs
    idx_offset = MIN_MAX[0] // split_size          # Python float floor-div = -50.0

    # Pad each feature's vocab slice (100 rows) to a 128 multiple with zero rows
    # so per-feature one-hots / K-tiles are lane-aligned. Clamped indices stay
    # in [0, num_embs-1], so the padding rows are never selected.
    embs_padded = _round_up(num_embs, 128)
    table_p = jnp.pad(table.reshape(F, num_embs, E),
                      ((0, 0), (0, embs_padded - num_embs), (0, 0)))
    table_p = table_p.reshape(F * embs_padded, E)

    # Row tiling: large tiles (amortize per-step overhead, fill MXU M dim).
    # Pad M up to a tile multiple; padded rows are discarded after the call.
    tm_eff = min(tm, _round_up(M, 8))
    M_pad = _round_up(M, tm_eff)
    x2 = x.reshape(M, F)
    if M_pad != M:
        x2 = jnp.pad(x2, ((0, M_pad - M), (0, 0)))

    kernel = functools.partial(
        _emb_encoder_kernel,
        num_embs=num_embs, num_features=F, embs_padded=embs_padded,
        inv_f=1.0 / F, idx_offset=idx_offset)

    out2 = pl.pallas_call(
        kernel,
        out_shape=jax.ShapeDtypeStruct((M_pad, E), jnp.float32),
        grid=(M_pad // tm_eff,),
        in_specs=[
            pl.BlockSpec((tm_eff, F), lambda i: (i, 0)),            # streamed row tiles
            # constant block index -> table DMA'd once, stays resident in VMEM
            pl.BlockSpec((F * embs_padded, E), lambda i: (0, 0)),
        ],
        out_specs=pl.BlockSpec((tm_eff, E), lambda i: (i, 0)),
        compiler_params=pltpu.CompilerParams(
            dimension_semantics=("parallel",)),
    )(x2, table_p)

    return out2[:M].reshape(B, S, E)


def _reference(x, table, num_embs=NUM_EMBS):
    """Pure-JAX reference matching the PyTorch forward."""
    F = x.shape[-1]
    split = (MIN_MAX[1] - MIN_MAX[0]) / num_embs
    off = MIN_MAX[0] // split
    idx = jnp.clip((x - off).astype(jnp.int32), 0, num_embs - 1)
    idx = idx + jnp.arange(F)[None, None, :] * num_embs
    return table[idx].mean(-2)


if __name__ == "__main__":
    key = jax.random.PRNGKey(0)
    kx, kw, kx2 = jax.random.split(key, 3)

    B, S, F, E = 2, 8, 4, 32                     # batch, seq, num_features, em_size
    x = jax.random.uniform(kx, (B, S, F), minval=-2.5, maxval=2.5,
                           dtype=jnp.float32)
    table = init_embedding_table(kw, F, E)

    out = jax.block_until_ready(embedding_encoder_forward(x, table))
    ref = _reference(x, table)
    assert out.shape == (B, S, E)
    assert jnp.allclose(out, ref, atol=1e-5, rtol=1e-5), "kernel/reference mismatch"

    # Also exercise the ragged path: M = 21 rows, tile of 8 -> pad to 24, 3 grid steps.
    x_odd = jax.random.uniform(kx2, (3, 7, F), minval=-2.5, maxval=2.5,
                               dtype=jnp.float32)
    out_odd = jax.block_until_ready(embedding_encoder_forward(x_odd, table, tm=8))
    ref_odd = _reference(x_odd, table)
    assert out_odd.shape == (3, 7, E)
    assert jnp.allclose(out_odd, ref_odd, atol=1e-5, rtol=1e-5), "ragged-path mismatch"

    print("KERNEL_OK")
</pallas_src>

<mosaic_0001>
module attributes {stable_mosaic.version = 11 : i64} {
  func.func @_emb_encoder_kernel(%arg0: i32, %arg1: memref<16x4xf32, #tpu.memory_space<vmem>>, %arg2: memref<512x32xf32, #tpu.memory_space<vmem>>, %arg3: memref<16x32xf32, #tpu.memory_space<vmem>>) attributes {dimension_semantics = [#tpu.dimension_semantics<parallel>], iteration_bounds = array<i64: 1>, scalar_prefetch = 0 : i64, scratch_operands = 0 : i64, tpu.core_type = #tpu.core_type<tc>, window_params = [{transform_indices = @transform_0, window_bounds = array<i64: 16, 4>}, {pipeline_mode = #tpu.pipeline_mode<synchronous>, transform_indices = @transform_1, window_bounds = array<i64: 512, 32>}, {transform_indices = @transform_2, window_bounds = array<i64: 16, 32>}]} {
    %c0 = arith.constant 0 : index
    %c0_0 = arith.constant 0 : index
    %0 = vector.load %arg1[%c0, %c0_0] : memref<16x4xf32, #tpu.memory_space<vmem>>, vector<16x4xf32>
    %cst = arith.constant -5.000000e+01 : f32
    %1 = vector.broadcast %cst : f32 to vector<16x4xf32>
    %2 = arith.subf %0, %1 : vector<16x4xf32>
    %3 = arith.fptosi %2 : vector<16x4xf32> to vector<16x4xi32>
    %c0_i32 = arith.constant 0 : i32
    %c99_i32 = arith.constant 99 : i32
    %4 = vector.broadcast %c0_i32 : i32 to vector<16x4xi32>
    %5 = arith.maxsi %4, %3 : vector<16x4xi32>
    %6 = vector.broadcast %c99_i32 : i32 to vector<16x4xi32>
    %7 = arith.minsi %6, %5 : vector<16x4xi32>
    %8 = tpu.iota {dimensions = array<i32: 1>} : vector<16x128xi32>
    %cst_1 = arith.constant 0.000000e+00 : f32
    %9 = vector.broadcast %cst_1 : f32 to vector<16x32xf32>
    %10 = vector.extract_strided_slice %7 {offsets = [0, 0], sizes = [16, 1], strides = [1, 1]} : vector<16x4xi32> to vector<16x1xi32>
    %11 = vector.broadcast %10 : vector<16x1xi32> to vector<16x128xi32>
    %12 = arith.cmpi eq, %11, %8 : vector<16x128xi32>
    %13 = arith.extui %12 : vector<16x128xi1> to vector<16x128xi32>
    %14 = arith.sitofp %13 : vector<16x128xi32> to vector<16x128xf32>
    %c0_2 = arith.constant 0 : index
    %c0_3 = arith.constant 0 : index
    %15 = vector.load %arg2[%c0_2, %c0_3] : memref<512x32xf32, #tpu.memory_space<vmem>>, vector<128x32xf32>
    %cst_4 = arith.constant dense<0.000000e+00> : vector<16x32xf32>
    %16 = tpu.matmul %14, %15, %cst_4 {dimension_numbers = #tpu.dot_dimension_numbers<[1], [0], [0], [1], [0, 0, 1, 1], [], []>} : vector<16x128xf32>, vector<128x32xf32>, vector<16x32xf32> -> vector<16x32xf32>
    %17 = arith.addf %9, %16 : vector<16x32xf32>
    %18 = vector.extract_strided_slice %7 {offsets = [0, 1], sizes = [16, 1], strides = [1, 1]} : vector<16x4xi32> to vector<16x1xi32>
    %19 = vector.broadcast %18 : vector<16x1xi32> to vector<16x128xi32>
    %20 = arith.cmpi eq, %19, %8 : vector<16x128xi32>
    %21 = arith.extui %20 : vector<16x128xi1> to vector<16x128xi32>
    %22 = arith.sitofp %21 : vector<16x128xi32> to vector<16x128xf32>
    %c128 = arith.constant 128 : index
    %c0_5 = arith.constant 0 : index
    %23 = vector.load %arg2[%c128, %c0_5] : memref<512x32xf32, #tpu.memory_space<vmem>>, vector<128x32xf32>
    %cst_6 = arith.constant dense<0.000000e+00> : vector<16x32xf32>
    %24 = tpu.matmul %22, %23, %cst_6 {dimension_numbers = #tpu.dot_dimension_numbers<[1], [0], [0], [1], [0, 0, 1, 1], [], []>} : vector<16x128xf32>, vector<128x32xf32>, vector<16x32xf32> -> vector<16x32xf32>
    %25 = arith.addf %17, %24 : vector<16x32xf32>
    %26 = vector.extract_strided_slice %7 {offsets = [0, 2], sizes = [16, 1], strides = [1, 1]} : vector<16x4xi32> to vector<16x1xi32>
    %27 = vector.broadcast %26 : vector<16x1xi32> to vector<16x128xi32>
    %28 = arith.cmpi eq, %27, %8 : vector<16x128xi32>
    %29 = arith.extui %28 : vector<16x128xi1> to vector<16x128xi32>
    %30 = arith.sitofp %29 : vector<16x128xi32> to vector<16x128xf32>
    %c256 = arith.constant 256 : index
    %c0_7 = arith.constant 0 : index
    %31 = vector.load %arg2[%c256, %c0_7] : memref<512x32xf32, #tpu.memory_space<vmem>>, vector<128x32xf32>
    %cst_8 = arith.constant dense<0.000000e+00> : vector<16x32xf32>
    %32 = tpu.matmul %30, %31, %cst_8 {dimension_numbers = #tpu.dot_dimension_numbers<[1], [0], [0], [1], [0, 0, 1, 1], [], []>} : vector<16x128xf32>, vector<128x32xf32>, vector<16x32xf32> -> vector<16x32xf32>
    %33 = arith.addf %25, %32 : vector<16x32xf32>
    %34 = vector.extract_strided_slice %7 {offsets = [0, 3], sizes = [16, 1], strides = [1, 1]} : vector<16x4xi32> to vector<16x1xi32>
    %35 = vector.broadcast %34 : vector<16x1xi32> to vector<16x128xi32>
    %36 = arith.cmpi eq, %35, %8 : vector<16x128xi32>
    %37 = arith.extui %36 : vector<16x128xi1> to vector<16x128xi32>
    %38 = arith.sitofp %37 : vector<16x128xi32> to vector<16x128xf32>
    %c384 = arith.constant 384 : index
    %c0_9 = arith.constant 0 : index
    %39 = vector.load %arg2[%c384, %c0_9] : memref<512x32xf32, #tpu.memory_space<vmem>>, vector<128x32xf32>
    %cst_10 = arith.constant dense<0.000000e+00> : vector<16x32xf32>
    %40 = tpu.matmul %38, %39, %cst_10 {dimension_numbers = #tpu.dot_dimension_numbers<[1], [0], [0], [1], [0, 0, 1, 1], [], []>} : vector<16x128xf32>, vector<128x32xf32>, vector<16x32xf32> -> vector<16x32xf32>
    %41 = arith.addf %33, %40 : vector<16x32xf32>
    %cst_11 = arith.constant 2.500000e-01 : f32
    %42 = vector.broadcast %cst_11 : f32 to vector<16x32xf32>
    %43 = arith.mulf %41, %42 : vector<16x32xf32>
    %c0_12 = arith.constant 0 : index
    %c0_13 = arith.constant 0 : index
    %44 = vector.load %arg3[%c0_12, %c0_13] : memref<16x32xf32, #tpu.memory_space<vmem>>, vector<16x32xf32>
    tpu.vector_store %arg3[%c0_12, %c0_13], %43 {strides = array<i32>} : memref<16x32xf32, #tpu.memory_space<vmem>>, vector<16x32xf32>,
    return
  }
  func.func @transform_0(%arg0: i32) -> (i32, i32) {
    %c0_i32 = arith.constant 0 : i32
    %c0_i32_0 = arith.constant 0 : i32
    return %arg0, %c0_i32 : i32, i32
  }
  func.func @transform_1(%arg0: i32) -> (i32, i32) {
    %c0_i32 = arith.constant 0 : i32
    %c0_i32_0 = arith.constant 0 : i32
    %c0_i32_1 = arith.constant 0 : i32
    return %c0_i32, %c0_i32_0 : i32, i32
  }
  func.func @transform_2(%arg0: i32) -> (i32, i32) {
    %c0_i32 = arith.constant 0 : i32
    %c0_i32_0 = arith.constant 0 : i32
    return %arg0, %c0_i32 : i32, i32
  }
}

</mosaic_0001>

<llo_original>
// kernel: tpu_custom_call.1
$region0: #{tpu_custom_call.1}
  #allocation0 [shape = 'u32[]', space=smem, size = 0x4, offset = 0x4, fixed_abs, tag = 'smem constant byte address 0x4 - core index']
  #allocation1 [shape = 'u32[72,128]{1,0:T(1,128)}', space=vmem, size = 0x9000, scoped, tag = 'internal scratch']
  %s0 = inlined_call_operand.vmem [shape: f32[16,4], index: 0, kind: input, shape index: {}]
  %s1 = inlined_call_operand.vmem [shape: f32[512,32], index: 1, kind: input, shape index: {}]
  %s2 = inlined_call_operand.hbm [shape: f32[16,32], index: 2, kind: output, shape index: {}]
  %s3 = sld [smem:[#allocation0]]
  $region18: #{tpu_custom_call.1} parent=0
    _
  %s5 = ssub.s32 1, %s3
  %s6 = scalar_select 0, %s5, %s3
  $region1: #{tpu_custom_call.1} parent=0
    #allocation2 [shape = 'u8[8192]{0}', space=vmem, size = 0x2000, scoped, tag = 'output window, operand 0, single buffered']
    #allocation3 [shape = 's32[1]{0}', space=sflag, size = 0x4, scoped, tag = 'scoped memory for tpu_custom_call.1']
    %7 = vsyncpa [#allocation3], 0
    // Predicated region
    $region2: #{tpu_custom_call.1} parent=1 // pred_check
      _
    $region3: #{tpu_custom_call.1} parent=1 // pred_check_branch
      %9 = sbr.rel (0) target = $region5
    $region4: #{tpu_custom_call.1} parent=1 // pred_region
      _
    $region5: #{tpu_custom_call.1} parent=1 // pred_fallthru
      _
    // Predicated region
    $region6: #{tpu_custom_call.1} parent=1 // pred_check
      _
    $region7: #{tpu_custom_call.1} parent=1 // pred_check_branch
      %11 = sbr.rel (0) target = $region9
    $region8: #{tpu_custom_call.1} parent=1 // pred_region
      _
    $region9: #{tpu_custom_call.1} parent=1 // pred_fallthru
      _
    %v12 = vld [vmem:[%s0] sm:$0xff]
    %v13 = vld [vmem:[%s0 + $0x8] sm:$0xff]
    %v14 = vsub.f32 %v12, -50.0
    %v15 = vsub.f32 %v13, -50.0
    %v16 = vcvt.f32.s32.to.zero.pseudo %v14
    %v17 = vcvt.f32.s32.to.zero.pseudo %v15
    %vm18 = vcmp.gt.s32.totalorder %v16, 0
    %v19 = vsel %vm18, %v16, 0
    %vm20 = vcmp.gt.s32.totalorder %v17, 0
    %v21 = vsel %vm20, %v17, 0
    %vm22 = vcmp.lt.s32.totalorder %v19, 99
    %v23 = vsel %vm22, %v19, 99
    %vm24 = vcmp.lt.s32.totalorder %v21, 99
    %v25 = vsel %vm24, %v21, 99
    %v26 = vlaneseq
    %v27 = vand.u32 %v26, 127
    %28 = vset.pattern.permute.xlu0 0
    %29 = vperm.xlu0 %28, %v23
    %v30 = vpop.permute.xlu0 %29
    %31 = vset.pattern.permute.xlu0 0
    %32 = vperm.xlu0 %31, %v25
    %v33 = vpop.permute.xlu0 %32
    %vm34 = vcmp.eq.s32.totalorder %v30, %v27
    %vm35 = vcmp.eq.s32.totalorder %v33, %v27
    %v36 = vsel %vm34, 1, 0
    %v37 = vsel %vm35, 1, 0
    %v38 = vcvt.s32.f32 %v36
    %v39 = vcvt.s32.f32 %v37
    %v40 = vld [vmem:[%s1] sm:$0xff]
    %v41 = vld [vmem:[%s1 + $0x8] sm:$0xff]
    %v42 = vld [vmem:[%s1 + $0x10] sm:$0xff]
    %v43 = vld [vmem:[%s1 + $0x18] sm:$0xff]
    %v44 = vld [vmem:[%s1 + $0x20] sm:$0xff]
    %v45 = vld [vmem:[%s1 + $0x28] sm:$0xff]
    %v46 = vld [vmem:[%s1 + $0x30] sm:$0xff]
    %v47 = vld [vmem:[%s1 + $0x38] sm:$0xff]
    %v48 = vld [vmem:[%s1 + $0x40] sm:$0xff]
    %v49 = vld [vmem:[%s1 + $0x48] sm:$0xff]
    %v50 = vld [vmem:[%s1 + $0x50] sm:$0xff]
    %v51 = vld [vmem:[%s1 + $0x58] sm:$0xff]
    %v52 = vld [vmem:[%s1 + $0x60] sm:$0xff]
    %v53 = vld [vmem:[%s1 + $0x68] sm:$0xff]
    %v54 = vld [vmem:[%s1 + $0x70] sm:$0xff]
    %v55 = vld [vmem:[%s1 + $0x78] sm:$0xff]
    %56 = vset.pattern.permute.xlu0 1
    %57 = vperm.xlu0 %56, %v23
    %v58 = vpop.permute.xlu0 %57
    %59 = vset.pattern.permute.xlu0 1
    %60 = vperm.xlu0 %59, %v25
    %v61 = vpop.permute.xlu0 %60
    %vm62 = vcmp.eq.s32.totalorder %v58, %v27
    %vm63 = vcmp.eq.s32.totalorder %v61, %v27
    %v64 = vsel %vm62, 1, 0
    %v65 = vsel %vm63, 1, 0
    %v66 = vcvt.s32.f32 %v64
    %v67 = vcvt.s32.f32 %v65
    %v68 = vld [vmem:[%s1 + $0x80] sm:$0xff]
    %v69 = vld [vmem:[%s1 + $0x88] sm:$0xff]
    %v70 = vld [vmem:[%s1 + $0x90] sm:$0xff]
    %v71 = vld [vmem:[%s1 + $0x98] sm:$0xff]
    %v72 = vld [vmem:[%s1 + $0xa0] sm:$0xff]
    %v73 = vld [vmem:[%s1 + $0xa8] sm:$0xff]
    %v74 = vld [vmem:[%s1 + $0xb0] sm:$0xff]
    %v75 = vld [vmem:[%s1 + $0xb8] sm:$0xff]
    %v76 = vld [vmem:[%s1 + $0xc0] sm:$0xff]
    %v77 = vld [vmem:[%s1 + $0xc8] sm:$0xff]
    %v78 = vld [vmem:[%s1 + $0xd0] sm:$0xff]
    %v79 = vld [vmem:[%s1 + $0xd8] sm:$0xff]
    %v80 = vld [vmem:[%s1 + $0xe0] sm:$0xff]
    %v81 = vld [vmem:[%s1 + $0xe8] sm:$0xff]
    %v82 = vld [vmem:[%s1 + $0xf0] sm:$0xff]
    %v83 = vld [vmem:[%s1 + $0xf8] sm:$0xff]
    %84 = vmatpush.msra.mxu0 %v83
    %85 = vmatpush.msra.mxu0 %v82
    %86 = vmatpush.msra.mxu0 %v81
    %87 = vmatpush.msra.mxu0 %v80
    %88 = vmatpush.msra.mxu0 %v79
    %89 = vmatpush.msra.mxu0 %v78
    %90 = vmatpush.msra.mxu0 %v77
    %91 = vmatpush.msra.mxu0 %v76
    %92 = vmatpush.msra.mxu0 %v75
    %93 = vmatpush.msra.mxu0 %v74
    %94 = vmatpush.msra.mxu0 %v73
    %95 = vmatpush.msra.mxu0 %v72
    %96 = vmatpush.msra.mxu0 %v71
    %97 = vmatpush.msra.mxu0 %v70
    %98 = vmatpush.msra.mxu0 %v69
    %99 = vmatpush.msra.mxu0 %v68
    %100 = vmatmul.f32.gmra.mxu0 %v66
    %v101 = vpop.f32.mrf.mxu0
    %v102 = vadd.f32 0.0, %v101
    %103 = vmatmul.f32.gmra.mxu0 %v67
    %v104 = vpop.f32.mrf.mxu0
    %v105 = vadd.f32 0.0, %v104
    %106 = vdwg.mxu0
    %107 = vmatpush.msra.mxu0 %v55
    %108 = vmatpush.msra.mxu0 %v54
    %109 = vmatpush.msra.mxu0 %v53
    %110 = vmatpush.msra.mxu0 %v52
    %111 = vmatpush.msra.mxu0 %v51
    %112 = vmatpush.msra.mxu0 %v50
    %113 = vmatpush.msra.mxu0 %v49
    %114 = vmatpush.msra.mxu0 %v48
    %115 = vmatpush.msra.mxu0 %v47
    %116 = vmatpush.msra.mxu0 %v46
    %117 = vmatpush.msra.mxu0 %v45
    %118 = vmatpush.msra.mxu0 %v44
    %119 = vmatpush.msra.mxu0 %v43
    %120 = vmatpush.msra.mxu0 %v42
    %121 = vmatpush.msra.mxu0 %v41
    %122 = vmatpush.msra.mxu0 %v40
    %123 = vmatmul.f32.gmra.mxu0 %v38
    %v124 = vpop.f32.mrf.mxu0
    %v125 = vadd.f32 %v102, %v124
    %126 = vmatmul.f32.gmra.mxu0 %v39
    %v127 = vpop.f32.mrf.mxu0
    %v128 = vadd.f32 %v105, %v127
    %129 = vdwg.mxu0
    %130 = vset.pattern.permute.xlu0 2
    %131 = vperm.xlu0 %130, %v23
    %v132 = vpop.permute.xlu0 %131
    %133 = vset.pattern.permute.xlu0 2
    %134 = vperm.xlu0 %133, %v25
    %v135 = vpop.permute.xlu0 %134
    %vm136 = vcmp.eq.s32.totalorder %v132, %v27
    %vm137 = vcmp.eq.s32.totalorder %v135, %v27
    %v138 = vsel %vm136, 1, 0
    %v139 = vsel %vm137, 1, 0
    %v140 = vcvt.s32.f32 %v138
    %v141 = vcvt.s32.f32 %v139
    %v142 = vld [vmem:[%s1 + $0x100] sm:$0xff]
    %v143 = vld [vmem:[%s1 + $0x108] sm:$0xff]
    %v144 = vld [vmem:[%s1 + $0x110] sm:$0xff]
    %v145 = vld [vmem:[%s1 + $0x118] sm:$0xff]
    %v146 = vld [vmem:[%s1 + $0x120] sm:$0xff]
    %v147 = vld [vmem:[%s1 + $0x128] sm:$0xff]
    %v148 = vld [vmem:[%s1 + $0x130] sm:$0xff]
    %v149 = vld [vmem:[%s1 + $0x138] sm:$0xff]
    %v150 = vld [vmem:[%s1 + $0x140] sm:$0xff]
    %v151 = vld [vmem:[%s1 + $0x148] sm:$0xff]
    %v152 = vld [vmem:[%s1 + $0x150] sm:$0xff]
    %v153 = vld [vmem:[%s1 + $0x158] sm:$0xff]
    %v154 = vld [vmem:[%s1 + $0x160] sm:$0xff]
    %v155 = vld [vmem:[%s1 + $0x168] sm:$0xff]
    %v156 = vld [vmem:[%s1 + $0x170] sm:$0xff]
    %v157 = vld [vmem:[%s1 + $0x178] sm:$0xff]
    %158 = vmatpush.msra.mxu0 %v157
    %159 = vmatpush.msra.mxu0 %v156
    %160 = vmatpush.msra.mxu0 %v155
    %161 = vmatpush.msra.mxu0 %v154
    %162 = vmatpush.msra.mxu0 %v153
    %163 = vmatpush.msra.mxu0 %v152
    %164 = vmatpush.msra.mxu0 %v151
    %165 = vmatpush.msra.mxu0 %v150
    %166 = vmatpush.msra.mxu0 %v149
    %167 = vmatpush.msra.mxu0 %v148
    %168 = vmatpush.msra.mxu0 %v147
    %169 = vmatpush.msra.mxu0 %v146
    %170 = vmatpush.msra.mxu0 %v145
    %171 = vmatpush.msra.mxu0 %v144
    %172 = vmatpush.msra.mxu0 %v143
    %173 = vmatpush.msra.mxu0 %v142
    %174 = vmatmul.f32.gmra.mxu0 %v140
    %v175 = vpop.f32.mrf.mxu0
    %v176 = vadd.f32 0.0, %v175
    %177 = vmatmul.f32.gmra.mxu0 %v141
    %v178 = vpop.f32.mrf.mxu0
    %v179 = vadd.f32 0.0, %v178
    %180 = vdwg.mxu0
    %v181 = vadd.f32 %v125, %v176
    %v182 = vadd.f32 %v128, %v179
    %183 = vset.pattern.permute.xlu0 3
    %184 = vperm.xlu0 %183, %v23
    %v185 = vpop.permute.xlu0 %184
    %186 = vset.pattern.permute.xlu0 3
    %187 = vperm.xlu0 %186, %v25
    %v188 = vpop.permute.xlu0 %187
    %vm189 = vcmp.eq.s32.totalorder %v185, %v27
    %vm190 = vcmp.eq.s32.totalorder %v188, %v27
    %v191 = vsel %vm189, 1, 0
    %v192 = vsel %vm190, 1, 0
    %v193 = vcvt.s32.f32 %v191
    %v194 = vcvt.s32.f32 %v192
    %v195 = vld [vmem:[%s1 + $0x180] sm:$0xff]
    %v196 = vld [vmem:[%s1 + $0x188] sm:$0xff]
    %v197 = vld [vmem:[%s1 + $0x190] sm:$0xff]
    %v198 = vld [vmem:[%s1 + $0x198] sm:$0xff]
    %v199 = vld [vmem:[%s1 + $0x1a0] sm:$0xff]
    %v200 = vld [vmem:[%s1 + $0x1a8] sm:$0xff]
    %v201 = vld [vmem:[%s1 + $0x1b0] sm:$0xff]
    %v202 = vld [vmem:[%s1 + $0x1b8] sm:$0xff]
    %v203 = vld [vmem:[%s1 + $0x1c0] sm:$0xff]
    %v204 = vld [vmem:[%s1 + $0x1c8] sm:$0xff]
    %v205 = vld [vmem:[%s1 + $0x1d0] sm:$0xff]
    %v206 = vld [vmem:[%s1 + $0x1d8] sm:$0xff]
    %v207 = vld [vmem:[%s1 + $0x1e0] sm:$0xff]
    %v208 = vld [vmem:[%s1 + $0x1e8] sm:$0xff]
    %v209 = vld [vmem:[%s1 + $0x1f0] sm:$0xff]
    %v210 = vld [vmem:[%s1 + $0x1f8] sm:$0xff]
    %211 = vmatpush.msra.mxu0 %v210
    %212 = vmatpush.msra.mxu0 %v209
    %213 = vmatpush.msra.mxu0 %v208
    %214 = vmatpush.msra.mxu0 %v207
    %215 = vmatpush.msra.mxu0 %v206
    %216 = vmatpush.msra.mxu0 %v205
    %217 = vmatpush.msra.mxu0 %v204
    %218 = vmatpush.msra.mxu0 %v203
    %219 = vmatpush.msra.mxu0 %v202
    %220 = vmatpush.msra.mxu0 %v201
    %221 = vmatpush.msra.mxu0 %v200
    %222 = vmatpush.msra.mxu0 %v199
    %223 = vmatpush.msra.mxu0 %v198
    %224 = vmatpush.msra.mxu0 %v197
    %225 = vmatpush.msra.mxu0 %v196
    %226 = vmatpush.msra.mxu0 %v195
    %227 = vmatmul.f32.gmra.mxu0 %v193
    %v228 = vpop.f32.mrf.mxu0
    %v229 = vadd.f32 0.0, %v228
    %230 = vmatmul.f32.gmra.mxu0 %v194
    %v231 = vpop.f32.mrf.mxu0
    %v232 = vadd.f32 0.0, %v231
    %233 = vdwg.mxu0
    %v234 = vadd.f32 %v181, %v229
    %v235 = vadd.f32 %v182, %v232
    %v236 = vmul.f32 %v234, 0.25
    %v237 = vmul.f32 %v235, 0.25
    %vm238 = vcmask 261120
    %239 = vst.msk [vmem:[#allocation2] sm:$0xff] %vm238, %v236
    %240 = vst.msk [vmem:[#allocation2 + $0x8] sm:$0xff] %vm238, %v237
    // Predicated region
    $region10: #{tpu_custom_call.1} parent=1 // pred_check
      _
    $region11: #{tpu_custom_call.1} parent=1 // pred_check_branch
      %242 = sbr.rel (0) target = $region13
    $region12: #{tpu_custom_call.1} parent=1 // pred_region
      %244 = vsyncadd [#allocation3], 0
      %s245 = sshll.u32 [#allocation2], 4
      %s246 = int_to_ptr.vmem [resolvable:$true] %s245
      %s247 = sshll.u32 %s2, 4
      %s248 = int_to_ptr.hbm [resolvable:$true] %s247
      %253 = dma.vmem_to_hbm [thread:$0]  %s246, 256, %s248, [#allocation3], 128, 128, 8
    $region13: #{tpu_custom_call.1} parent=1 // pred_fallthru
      _
    // Predicated region
    $region14: #{tpu_custom_call.1} parent=1 // pred_check
      _
    $region15: #{tpu_custom_call.1} parent=1 // pred_check_branch
      %255 = sbr.rel (0) target = $region17
    $region16: #{tpu_custom_call.1} parent=1 // pred_region
      %257 = dma.done [#allocation3], 256
    $region17: #{tpu_custom_call.1} parent=1 // pred_fallthru
      _
    %258 = vsyncpa [#allocation3], 1

</llo_original>
